<compile_context>
chip_gen: v5e
topology: v5e:2x2
jax: 0.10.0
libtpu: 0.0.40
codegen_flags: <defaults>
</compile_context>

<pallas_src>
import numpy as np
import jax
import jax.numpy as jnp
from jax.experimental import pallas as pl
from jax.experimental.pallas import tpu as pltpu

D_IN = 60
H = 30
NUM_CLASSES = 10
NEG_SLOPE = 0.01  # F.leaky_relu default negative_slope

_LANE = 128      # last dim of every VMEM block is padded to 128 lanes
_SUBLANE = 8     # f32 sublane granularity (batch-tile rows must be a multiple of 8)
_VMEM_TILE_BUDGET = 40 * 1024 * 1024  # headroom under v7x's 64 MiB physical VMEM


def _round_up(a, m):
    return ((a + m - 1) // m) * m


def _mlp_kernel(x_ref, w1_ref, b1_ref, w2_ref, b2_ref, *out_refs):
    # x_ref:  [TILE_N, D_in]   w1_ref: [D_in, H]   b1_ref: [1, H]
    # w2_ref: [H, C]           b2_ref: [1, C]
    # out_refs: (h_ref, y_ref) or (y_ref,)
    x = x_ref[...].astype(jnp.float32)
    # linear1 + leaky_relu (MXU + VPU epilogue)
    h = jnp.dot(x, w1_ref[...], preferred_element_type=jnp.float32) + b1_ref[...]
    h = jnp.where(h >= 0, h, NEG_SLOPE * h)
    if len(out_refs) == 2:
        h_ref, y_ref = out_refs
        h_ref[...] = h.astype(h_ref.dtype)
    else:
        (y_ref,) = out_refs
    # linear2
    y = jnp.dot(h, w2_ref[...], preferred_element_type=jnp.float32) + b2_ref[...]
    y_ref[...] = y.astype(y_ref.dtype)


def mlp_syn_forward(x, w1, b1, w2, b2, *, tile_n=8192, return_hidden=True,
                    out_dtype=None):
    """x: [..., 60] (flattened to [-1, 60] like the PyTorch .view).

    Returns (hidden, logits) if return_hidden else logits only.
    out_dtype: dtype of the kernel outputs (defaults to x.dtype); compute is f32.
    """
    x2d = x.reshape(-1, D_IN)
    n = x2d.shape[0]
    out_dtype = np.dtype(x2d.dtype) if out_dtype is None else np.dtype(out_dtype)
    b1_2d = b1.reshape(1, H).astype(jnp.float32)
    b2_2d = b2.reshape(1, NUM_CLASSES).astype(jnp.float32)

    # ---- tile-size selection (VMEM-budgeted with the lane-padded footprint) ----
    n_out_blocks = 2 if return_hidden else 1
    # Each streamed block occupies tn x 128 lanes in VMEM regardless of its nominal
    # feature width (60/30/10); the pipeline double-buffers every streamed operand.
    padded_row_bytes = _LANE * np.dtype(x2d.dtype).itemsize \
        + n_out_blocks * _LANE * out_dtype.itemsize
    db_row_bytes = 2 * padded_row_bytes  # double-buffered

    tn = min(int(tile_n), (_VMEM_TILE_BUDGET // db_row_bytes) // _SUBLANE * _SUBLANE)
    # Keep at least 2 grid steps so ("parallel",) can use both TensorCores on v7x.
    tn = min(tn, _round_up(pl.cdiv(n, 2), _SUBLANE))
    # Don't allocate a block far larger than the array.
    tn = min(tn, _round_up(n, _SUBLANE))
    tn = max(tn, _SUBLANE)
    grid = (pl.cdiv(n, tn),)  # ragged last block is padded/masked by Pallas

    # ---- specs ----
    in_specs = [
        # x tiles stream over the batch axis (double-buffered by Pallas).
        pl.BlockSpec((tn, D_IN), lambda i: (i, 0)),
        # Weights / biases: constant index_map -> fetched once, VMEM-resident.
        pl.BlockSpec((D_IN, H), lambda i: (0, 0)),
        pl.BlockSpec((1, H), lambda i: (0, 0)),
        pl.BlockSpec((H, NUM_CLASSES), lambda i: (0, 0)),
        pl.BlockSpec((1, NUM_CLASSES), lambda i: (0, 0)),
    ]
    if return_hidden:
        out_shape = (
            jax.ShapeDtypeStruct((n, H), out_dtype),
            jax.ShapeDtypeStruct((n, NUM_CLASSES), out_dtype),
        )
        out_specs = (
            pl.BlockSpec((tn, H), lambda i: (i, 0)),
            pl.BlockSpec((tn, NUM_CLASSES), lambda i: (i, 0)),
        )
    else:
        out_shape = jax.ShapeDtypeStruct((n, NUM_CLASSES), out_dtype)
        out_specs = pl.BlockSpec((tn, NUM_CLASSES), lambda i: (i, 0))

    # ---- scheduling hints ----
    flops = 2 * n * (D_IN * H + H * NUM_CLASSES)
    bytes_accessed = (
        n * D_IN * np.dtype(x2d.dtype).itemsize
        + n * (H * int(return_hidden) + NUM_CLASSES) * out_dtype.itemsize
        + (D_IN * H + H + H * NUM_CLASSES + NUM_CLASSES) * 4
    )
    cost = pl.CostEstimate(flops=flops, transcendentals=0,
                           bytes_accessed=bytes_accessed)

    # Actual padded, double-buffered working set + ~2 MiB for weights/slack,
    # clamped to [32 MiB, 48 MiB] (48 MiB still leaves room under v7x's 64 MiB).
    vmem_limit = int(min(48 * 1024 * 1024,
                         max(32 * 1024 * 1024, db_row_bytes * tn + 2 * 1024 * 1024)))

    out = pl.pallas_call(
        _mlp_kernel,
        out_shape=out_shape,
        grid_spec=pl.GridSpec(grid=grid, in_specs=in_specs, out_specs=out_specs),
        compiler_params=pltpu.CompilerParams(
            dimension_semantics=("parallel",),  # batch axis: shard across TCs on v7x
            vmem_limit_bytes=vmem_limit,
        ),
        cost_estimate=cost,
    )(x2d, w1.astype(jnp.float32), b1_2d, w2.astype(jnp.float32), b2_2d)
    return out


def init_params(key):
    """Deterministic init mimicking nn.Linear's uniform(-1/sqrt(fan_in), 1/sqrt(fan_in)).
    Weights stored pre-transposed: w1 [D_in, H], w2 [H, C]."""
    k1, k2, k3, k4 = jax.random.split(key, 4)
    lim1 = 1.0 / jnp.sqrt(D_IN)
    lim2 = 1.0 / jnp.sqrt(H)
    w1 = jax.random.uniform(k1, (D_IN, H), jnp.float32, -lim1, lim1)
    b1 = jax.random.uniform(k2, (H,), jnp.float32, -lim1, lim1)
    w2 = jax.random.uniform(k3, (H, NUM_CLASSES), jnp.float32, -lim2, lim2)
    b2 = jax.random.uniform(k4, (NUM_CLASSES,), jnp.float32, -lim2, lim2)
    return w1, b1, w2, b2


def _reference(x, w1, b1, w2, b2):
    x2d = x.reshape(-1, D_IN)
    h = x2d @ w1 + b1
    h = jnp.where(h >= 0, h, NEG_SLOPE * h)
    y = h @ w2 + b2
    return h, y


if __name__ == "__main__":
    key = jax.random.PRNGKey(0)
    kx1, kx2, kx3, kp = jax.random.split(key, 4)
    w1, b1, w2, b2 = init_params(kp)

    # 1) Small test: batch=8, single block.
    x_small = jax.random.normal(kx1, (8, D_IN), jnp.float32)
    h_s, y_s = mlp_syn_forward(x_small, w1, b1, w2, b2)
    jax.block_until_ready((h_s, y_s))
    h_ref, y_ref = _reference(x_small, w1, b1, w2, b2)
    assert jnp.allclose(h_s, h_ref, atol=1e-5), "hidden mismatch (small)"
    assert jnp.allclose(y_s, y_ref, atol=1e-5), "logits mismatch (small)"

    # 2) Multi-block test with a ragged edge: n=200, tile_n=64 -> grid=4.
    x_big = jax.random.normal(kx2, (200, D_IN), jnp.float32)
    h_b, y_b = mlp_syn_forward(x_big, w1, b1, w2, b2, tile_n=64)
    jax.block_until_ready((h_b, y_b))
    h_ref_b, y_ref_b = _reference(x_big, w1, b1, w2, b2)
    assert jnp.allclose(h_b, h_ref_b, atol=1e-5), "hidden mismatch (tiled)"
    assert jnp.allclose(y_b, y_ref_b, atol=1e-5), "logits mismatch (tiled)"

    # 3) Default tiling path: n=2056 -> tn clamped to ceil(n/2) -> 2 even-ish steps.
    x_med = jax.random.normal(kx3, (2056, D_IN), jnp.float32)
    h_m, y_m = mlp_syn_forward(x_med, w1, b1, w2, b2)
    jax.block_until_ready((h_m, y_m))
    h_ref_m, y_ref_m = _reference(x_med, w1, b1, w2, b2)
    assert jnp.allclose(h_m, h_ref_m, atol=1e-5), "hidden mismatch (default tiling)"
    assert jnp.allclose(y_m, y_ref_m, atol=1e-5), "logits mismatch (default tiling)"

    # 4) Logits-only variant (skips the hidden writeback, ~30% less HBM traffic).
    y_only = mlp_syn_forward(x_big, w1, b1, w2, b2, tile_n=64, return_hidden=False)
    jax.block_until_ready(y_only)
    assert jnp.allclose(y_only, y_ref_b, atol=1e-5), "logits mismatch (logits-only)"

    print("KERNEL_OK")
</pallas_src>

<mosaic_0001>
module attributes {stable_mosaic.version = 11 : i64} {
  func.func @_mlp_kernel(%arg0: i32, %arg1: memref<8x60xf32, #tpu.memory_space<vmem>>, %arg2: memref<60x30xf32, #tpu.memory_space<vmem>>, %arg3: memref<1x30xf32, #tpu.memory_space<vmem>>, %arg4: memref<30x10xf32, #tpu.memory_space<vmem>>, %arg5: memref<1x10xf32, #tpu.memory_space<vmem>>, %arg6: memref<8x30xf32, #tpu.memory_space<vmem>>, %arg7: memref<8x10xf32, #tpu.memory_space<vmem>>) attributes {dimension_semantics = [#tpu.dimension_semantics<parallel>], iteration_bounds = array<i64: 1>, scalar_prefetch = 0 : i64, scratch_operands = 0 : i64, tpu.core_type = #tpu.core_type<tc>, window_params = [{transform_indices = @transform_0, window_bounds = array<i64: 8, 60>}, {pipeline_mode = #tpu.pipeline_mode<synchronous>, transform_indices = @transform_1, window_bounds = array<i64: 60, 30>}, {pipeline_mode = #tpu.pipeline_mode<synchronous>, transform_indices = @transform_2, window_bounds = array<i64: 1, 30>}, {pipeline_mode = #tpu.pipeline_mode<synchronous>, transform_indices = @transform_3, window_bounds = array<i64: 30, 10>}, {pipeline_mode = #tpu.pipeline_mode<synchronous>, transform_indices = @transform_4, window_bounds = array<i64: 1, 10>}, {transform_indices = @transform_5, window_bounds = array<i64: 8, 30>}, {transform_indices = @transform_6, window_bounds = array<i64: 8, 10>}]} {
    %c0 = arith.constant 0 : index
    %c0_0 = arith.constant 0 : index
    %0 = vector.load %arg1[%c0, %c0_0] : memref<8x60xf32, #tpu.memory_space<vmem>>, vector<8x60xf32>
    %c0_1 = arith.constant 0 : index
    %c0_2 = arith.constant 0 : index
    %1 = vector.load %arg2[%c0_1, %c0_2] : memref<60x30xf32, #tpu.memory_space<vmem>>, vector<60x30xf32>
    %cst = arith.constant dense<0.000000e+00> : vector<8x30xf32>
    %2 = tpu.matmul %0, %1, %cst {dimension_numbers = #tpu.dot_dimension_numbers<[1], [0], [0], [1], [0, 0, 1, 1], [], []>} : vector<8x60xf32>, vector<60x30xf32>, vector<8x30xf32> -> vector<8x30xf32>
    %c0_3 = arith.constant 0 : index
    %c0_4 = arith.constant 0 : index
    %3 = vector.load %arg3[%c0_3, %c0_4] : memref<1x30xf32, #tpu.memory_space<vmem>>, vector<1x30xf32>
    %4 = vector.broadcast %3 : vector<1x30xf32> to vector<8x30xf32>
    %5 = arith.addf %2, %4 : vector<8x30xf32>
    %cst_5 = arith.constant 0.000000e+00 : f32
    %6 = vector.broadcast %cst_5 : f32 to vector<8x30xf32>
    %7 = arith.cmpf oge, %5, %6 : vector<8x30xf32>
    %cst_6 = arith.constant 0.00999999977 : f32
    %8 = vector.broadcast %cst_6 : f32 to vector<8x30xf32>
    %9 = arith.mulf %8, %5 : vector<8x30xf32>
    %10 = arith.select %7, %5, %9 : vector<8x30xi1>, vector<8x30xf32>
    %c0_7 = arith.constant 0 : index
    %c0_8 = arith.constant 0 : index
    %11 = vector.load %arg6[%c0_7, %c0_8] : memref<8x30xf32, #tpu.memory_space<vmem>>, vector<8x30xf32>
    tpu.vector_store %arg6[%c0_7, %c0_8], %10 {strides = array<i32>} : memref<8x30xf32, #tpu.memory_space<vmem>>, vector<8x30xf32>,
    %c0_9 = arith.constant 0 : index
    %c0_10 = arith.constant 0 : index
    %12 = vector.load %arg4[%c0_9, %c0_10] : memref<30x10xf32, #tpu.memory_space<vmem>>, vector<30x10xf32>
    %cst_11 = arith.constant dense<0.000000e+00> : vector<8x10xf32>
    %13 = tpu.matmul %10, %12, %cst_11 {dimension_numbers = #tpu.dot_dimension_numbers<[1], [0], [0], [1], [0, 0, 1, 1], [], []>} : vector<8x30xf32>, vector<30x10xf32>, vector<8x10xf32> -> vector<8x10xf32>
    %c0_12 = arith.constant 0 : index
    %c0_13 = arith.constant 0 : index
    %14 = vector.load %arg5[%c0_12, %c0_13] : memref<1x10xf32, #tpu.memory_space<vmem>>, vector<1x10xf32>
    %15 = vector.broadcast %14 : vector<1x10xf32> to vector<8x10xf32>
    %16 = arith.addf %13, %15 : vector<8x10xf32>
    %c0_14 = arith.constant 0 : index
    %c0_15 = arith.constant 0 : index
    %17 = vector.load %arg7[%c0_14, %c0_15] : memref<8x10xf32, #tpu.memory_space<vmem>>, vector<8x10xf32>
    tpu.vector_store %arg7[%c0_14, %c0_15], %16 {strides = array<i32>} : memref<8x10xf32, #tpu.memory_space<vmem>>, vector<8x10xf32>,
    return
  }
  func.func @transform_0(%arg0: i32) -> (i32, i32) {
    %c0_i32 = arith.constant 0 : i32
    %c0_i32_0 = arith.constant 0 : i32
    return %arg0, %c0_i32 : i32, i32
  }
  func.func @transform_1(%arg0: i32) -> (i32, i32) {
    %c0_i32 = arith.constant 0 : i32
    %c0_i32_0 = arith.constant 0 : i32
    %c0_i32_1 = arith.constant 0 : i32
    return %c0_i32, %c0_i32_0 : i32, i32
  }
  func.func @transform_2(%arg0: i32) -> (i32, i32) {
    %c0_i32 = arith.constant 0 : i32
    %c0_i32_0 = arith.constant 0 : i32
    %c0_i32_1 = arith.constant 0 : i32
    return %c0_i32, %c0_i32_0 : i32, i32
  }
  func.func @transform_3(%arg0: i32) -> (i32, i32) {
    %c0_i32 = arith.constant 0 : i32
    %c0_i32_0 = arith.constant 0 : i32
    %c0_i32_1 = arith.constant 0 : i32
    return %c0_i32, %c0_i32_0 : i32, i32
  }
  func.func @transform_4(%arg0: i32) -> (i32, i32) {
    %c0_i32 = arith.constant 0 : i32
    %c0_i32_0 = arith.constant 0 : i32
    %c0_i32_1 = arith.constant 0 : i32
    return %c0_i32, %c0_i32_0 : i32, i32
  }
  func.func @transform_5(%arg0: i32) -> (i32, i32) {
    %c0_i32 = arith.constant 0 : i32
    %c0_i32_0 = arith.constant 0 : i32
    return %arg0, %c0_i32 : i32, i32
  }
  func.func @transform_6(%arg0: i32) -> (i32, i32) {
    %c0_i32 = arith.constant 0 : i32
    %c0_i32_0 = arith.constant 0 : i32
    return %arg0, %c0_i32 : i32, i32
  }
}

</mosaic_0001>

<llo_original>
// kernel: tpu_custom_call.1
$region0: #{tpu_custom_call.1}
  #allocation0 [shape = 'u32[]', space=smem, size = 0x4, offset = 0x4, fixed_abs, tag = 'smem constant byte address 0x4 - core index']
  #allocation1 [shape = 'u32[72,128]{1,0:T(1,128)}', space=vmem, size = 0x9000, scoped, tag = 'internal scratch']
  %s0 = inlined_call_operand.vmem [shape: f32[8,60], index: 0, kind: input, shape index: {}]
  %s1 = inlined_call_operand.vmem [shape: f32[60,30], index: 1, kind: input, shape index: {}]
  %s2 = inlined_call_operand.vmem [shape: f32[1,30], index: 2, kind: input, shape index: {}]
  %s3 = inlined_call_operand.vmem [shape: f32[30,10], index: 3, kind: input, shape index: {}]
  %s4 = inlined_call_operand.vmem [shape: f32[1,10], index: 4, kind: input, shape index: {}]
  %s5 = inlined_call_operand.hbm [shape: f32[8,30], index: 5, kind: output, shape index: {0}]
  %s6 = inlined_call_operand.hbm [shape: f32[8,10], index: 6, kind: output, shape index: {1}]
  %7 = xla_tuple %s5, %s6
  %s8 = sld [smem:[#allocation0]]
  $region38: #{tpu_custom_call.1} parent=0
    _
  %s10 = ssub.s32 1, %s8
  %s11 = scalar_select 0, %s10, %s8
  $region1: #{tpu_custom_call.1} parent=0
    #allocation2 [shape = 'u8[4096]{0}', space=vmem, size = 0x1000, scoped, tag = 'output window, operand 0, single buffered']
    #allocation3 [shape = 's32[1]{0}', space=sflag, size = 0x4, scoped, tag = 'scoped memory for tpu_custom_call.1']
    #allocation4 [shape = 'u8[4096]{0}', space=vmem, size = 0x1000, scoped, tag = 'output window, operand 1, single buffered']
    #allocation5 [shape = 's32[1]{0}', space=sflag, size = 0x4, scoped, tag = 'scoped memory for tpu_custom_call.1']
    %12 = vsyncpa [#allocation3], 0
    %13 = vsyncpa [#allocation5], 0
    // Predicated region
    $region2: #{tpu_custom_call.1} parent=1 // pred_check
      _
    $region3: #{tpu_custom_call.1} parent=1 // pred_check_branch
      %15 = sbr.rel (0) target = $region5
    $region4: #{tpu_custom_call.1} parent=1 // pred_region
      _
    $region5: #{tpu_custom_call.1} parent=1 // pred_fallthru
      _
    // Predicated region
    $region6: #{tpu_custom_call.1} parent=1 // pred_check
      _
    $region7: #{tpu_custom_call.1} parent=1 // pred_check_branch
      %17 = sbr.rel (0) target = $region9
    $region8: #{tpu_custom_call.1} parent=1 // pred_region
      _
    $region9: #{tpu_custom_call.1} parent=1 // pred_fallthru
      _
    // Predicated region
    $region10: #{tpu_custom_call.1} parent=1 // pred_check
      _
    $region11: #{tpu_custom_call.1} parent=1 // pred_check_branch
      %19 = sbr.rel (0) target = $region13
    $region12: #{tpu_custom_call.1} parent=1 // pred_region
      _
    $region13: #{tpu_custom_call.1} parent=1 // pred_fallthru
      _
    // Predicated region
    $region14: #{tpu_custom_call.1} parent=1 // pred_check
      _
    $region15: #{tpu_custom_call.1} parent=1 // pred_check_branch
      %21 = sbr.rel (0) target = $region17
    $region16: #{tpu_custom_call.1} parent=1 // pred_region
      _
    $region17: #{tpu_custom_call.1} parent=1 // pred_fallthru
      _
    // Predicated region
    $region18: #{tpu_custom_call.1} parent=1 // pred_check
      _
    $region19: #{tpu_custom_call.1} parent=1 // pred_check_branch
      %23 = sbr.rel (0) target = $region21
    $region20: #{tpu_custom_call.1} parent=1 // pred_region
      _
    $region21: #{tpu_custom_call.1} parent=1 // pred_fallthru
      _
    %v24 = vld [vmem:[%s0] sm:$0xff]
    %v25 = vld [vmem:[%s1] sm:$0xff]
    %v26 = vld [vmem:[%s1 + $0x8] sm:$0xff]
    %v27 = vld [vmem:[%s1 + $0x10] sm:$0xff]
    %v28 = vld [vmem:[%s1 + $0x18] sm:$0xff]
    %v29 = vld [vmem:[%s1 + $0x20] sm:$0xff]
    %v30 = vld [vmem:[%s1 + $0x28] sm:$0xff]
    %v31 = vld [vmem:[%s1 + $0x30] sm:$0xff]
    %v32 = vld [vmem:[%s1 + $0x38] sm:$0xf]
    %v33 = vld [vmem:[%s2] sm:$0x1]
    %v35 = vperm.slane %v33, 0
    %vm37 = vcmask 490496
    %v39 = vsel %vm37, %v24, 0
    %vm41 = vcmask 1043456
    %v43 = vsel %vm41, %v32, 0
    %45 = vmatpush.msra.mxu0 0.0
    %46 = vmatpush.msra.mxu0 0.0
    %47 = vmatpush.msra.mxu0 0.0
    %48 = vmatpush.msra.mxu0 0.0
    %49 = vmatpush.msra.mxu0 0.0
    %50 = vmatpush.msra.mxu0 0.0
    %51 = vmatpush.msra.mxu0 0.0
    %52 = vmatpush.msra.mxu0 0.0
    %53 = vmatpush.msra.mxu0 %v43
    %54 = vmatpush.msra.mxu0 %v31
    %55 = vmatpush.msra.mxu0 %v30
    %56 = vmatpush.msra.mxu0 %v29
    %57 = vmatpush.msra.mxu0 %v28
    %58 = vmatpush.msra.mxu0 %v27
    %59 = vmatpush.msra.mxu0 %v26
    %60 = vmatpush.msra.mxu0 %v25
    %61 = vmatmul.f32.gmra.mxu0 %v39
    %v62 = vpop.f32.mrf.mxu0
    %v63 = vadd.f32 %v35, %v62
    %64 = vdwg.mxu0
    %vm65 = vcmp.ge.f32.partialorder %v63, 0.0
    %v66 = vmul.f32 %v63, 0.01
    %v67 = vsel %vm65, %v63, %v66
    %vm68 = vcmask 244736
    %69 = vst.msk [vmem:[#allocation2] sm:$0xff] %vm68, %v67
    %v70 = vld [vmem:[%s3] sm:$0xff]
    %v71 = vld [vmem:[%s3 + $0x8] sm:$0xff]
    %v72 = vld [vmem:[%s3 + $0x10] sm:$0xff]
    %v73 = vld [vmem:[%s3 + $0x18] sm:$0x3f]
    %v74 = vld [vmem:[%s4] sm:$0x1]
    %v76 = vperm.slane %v74, 0
    %v79 = vsel %vm68, %v67, 0
    %vm81 = vcmask 1045504
    %v83 = vsel %vm81, %v73, 0
    %85 = vmatpush.msra.mxu0 0.0
    %86 = vmatpush.msra.mxu0 0.0
    %87 = vmatpush.msra.mxu0 0.0
    %88 = vmatpush.msra.mxu0 0.0
    %89 = vmatpush.msra.mxu0 0.0
    %90 = vmatpush.msra.mxu0 0.0
    %91 = vmatpush.msra.mxu0 0.0
    %92 = vmatpush.msra.mxu0 0.0
    %93 = vmatpush.msra.mxu0 0.0
    %94 = vmatpush.msra.mxu0 0.0
    %95 = vmatpush.msra.mxu0 0.0
    %96 = vmatpush.msra.mxu0 0.0
    %97 = vmatpush.msra.mxu0 %v83
    %98 = vmatpush.msra.mxu0 %v72
    %99 = vmatpush.msra.mxu0 %v71
    %100 = vmatpush.msra.mxu0 %v70
    %101 = vmatmul.f32.gmra.mxu0 %v79
    %v102 = vpop.f32.mrf.mxu0
    %v103 = vadd.f32 %v76, %v102
    %104 = vdwg.mxu0
    %vm105 = vcmask 80896
    %106 = vst.msk [vmem:[#allocation4] sm:$0xff] %vm105, %v103
    // Predicated region
    $region22: #{tpu_custom_call.1} parent=1 // pred_check
      _
    $region23: #{tpu_custom_call.1} parent=1 // pred_check_branch
      %108 = sbr.rel (0) target = $region25
    $region24: #{tpu_custom_call.1} parent=1 // pred_region
      %110 = vsyncadd [#allocation3], 0
      %s112 = sshll.u32 [#allocation2], 4
      %s113 = int_to_ptr.vmem [resolvable:$true] %s112
      %s114 = sshll.u32 %s5, 4
      %s115 = int_to_ptr.hbm [resolvable:$true] %s114
      %117 = dma.vmem_to_hbm [thread:$0]  %s113, 128, %s115, [#allocation3]
    $region25: #{tpu_custom_call.1} parent=1 // pred_fallthru
      _
    // Predicated region
    $region26: #{tpu_custom_call.1} parent=1 // pred_check
      _
    $region27: #{tpu_custom_call.1} parent=1 // pred_check_branch
      %119 = sbr.rel (0) target = $region29
    $region28: #{tpu_custom_call.1} parent=1 // pred_region
      %121 = vsyncadd [#allocation5], 0
      %s123 = sshll.u32 [#allocation4], 4
      %s124 = int_to_ptr.vmem [resolvable:$true] %s123
      %s125 = sshll.u32 %s6, 4
      %s126 = int_to_ptr.hbm [resolvable:$true] %s125
      %128 = dma.vmem_to_hbm [thread:$0]  %s124, 128, %s126, [#allocation5]
    $region29: #{tpu_custom_call.1} parent=1 // pred_fallthru
      _
    // Predicated region
    $region30: #{tpu_custom_call.1} parent=1 // pred_check
      _
    $region31: #{tpu_custom_call.1} parent=1 // pred_check_branch
      %130 = sbr.rel (0) target = $region33
    $region32: #{tpu_custom_call.1} parent=1 // pred_region
      %132 = dma.done [#allocation3], 128
    $region33: #{tpu_custom_call.1} parent=1 // pred_fallthru
      _
    // Predicated region
    $region34: #{tpu_custom_call.1} parent=1 // pred_check
      _
    $region35: #{tpu_custom_call.1} parent=1 // pred_check_branch
      %134 = sbr.rel (0) target = $region37
    $region36: #{tpu_custom_call.1} parent=1 // pred_region
      %136 = dma.done [#allocation5], 128
    $region37: #{tpu_custom_call.1} parent=1 // pred_fallthru
      _
    %137 = vsyncpa [#allocation3], 1
    %138 = vsyncpa [#allocation5], 1

</llo_original>
